<compile_context>
chip_gen: v7x
topology: tpu7x:2x2x1
jax: 0.10.0
libtpu: 0.0.40
codegen_flags: <defaults>
</compile_context>

<pallas_src>
import jax
import jax.numpy as jnp
import numpy as np
from jax.experimental import pallas as pl
from jax.experimental.pallas import tpu as pltpu


def _fused_pool_kernel(p_ref, x_ref, o_ref):
    # p_ref: (BR, C)       stacked pooling matrices of all bins (VMEM resident)
    # x_ref: (bN, C, tT)   EEG data for the current (subject-block, time-tile)
    # o_ref: (bN, BR, tT)  pooled regions of ALL bins for this block
    p = p_ref[...]
    bn = x_ref.shape[0]

    def one_subject(n):
        o_ref[n] = jnp.dot(
            p, x_ref[n], preferred_element_type=jnp.float32
        ).astype(o_ref.dtype)

    if bn <= 8:
        # small static unroll
        for n in range(bn):
            one_subject(n)
    else:
        def body(n, carry):
            one_subject(n)
            return carry
        jax.lax.fori_loop(0, bn, body, 0)


def _vmem_budget_bytes() -> int:
    """Generation-aware scoped-VMEM budget (headroom under physical VMEM):
    ~90 MiB on v5e/v6e (128 MiB physical), ~45 MiB on v7x (64 MiB physical)."""
    try:
        cap = int(pltpu.get_tpu_info().vmem_capacity_bytes)
    except Exception:
        cap = 64 << 20  # conservative fallback = v7x physical VMEM
    return int(cap * 0.70)


def _round_up(x: int, m: int) -> int:
    return -(-x // m) * m


def _pick_tiles(n, c, t, br, x_bytes_per_elem, block_budget_bytes):
    """Byte-budget driven tiling.  Choose (bN, tile_t) so one grid step moves
    as much data as fits the budget (double-buffered x read + out write),
    lane-dense (tile_t is a multiple of 128 or the full T).  If the full time
    axis fits, block subjects together instead so the per-step overhead is
    still amortized when T is short relative to N."""
    # per lane, per subject: x read + f32 out write, x2 for double buffering
    bytes_per_lane = 2 * (x_bytes_per_elem * c + 4 * br)
    tile_t_max = max(1, block_budget_bytes // bytes_per_lane)
    if tile_t_max >= t:
        tile_t = t  # full time axis (block dim == full array dim is legal)
        t_pad = _round_up(t, 128)
        bn = block_budget_bytes // (bytes_per_lane * t_pad)
        bn = int(max(1, min(n, bn, 512)))  # cap unroll / DMA descriptor size
    else:
        tile_t = max(128, (tile_t_max // 128) * 128)
        bn = 1
    return bn, tile_t


def regions_to_bins(x, pool_mats, *, stream_bf16=False, as_tuple=True):
    """x: (N, C, T) float32; pool_mats: (B, R, C) float32.

    Returns a tuple of B arrays (N, R, T) (module API), or the stacked
    (N, B, R, T) array when as_tuple=False (cheaper: avoids B slice copies)."""
    N, C, T = x.shape
    B, R, Cp = pool_mats.shape
    assert Cp == C
    BR = B * R

    p_flat = pool_mats.reshape(BR, C)
    if stream_bf16:
        # Halve the dominant HBM read stream; accumulation stays f32 in the dot.
        x_in = x.astype(jnp.bfloat16)
        p_flat = p_flat.astype(jnp.bfloat16)
        x_bpe = 2
    else:
        x_in = x
        p_flat = p_flat.astype(jnp.float32)
        x_bpe = 4

    vmem_limit = _vmem_budget_bytes()
    block_budget = int(vmem_limit * 0.8)  # leave margin for P + internal scratch
    bN, tile_t = _pick_tiles(N, C, T, BR, x_bpe, block_budget)

    nn = pl.cdiv(N, bN)
    nt = pl.cdiv(T, tile_t)

    # Put the larger axis first so megacore (v7x) has enough iterations to split.
    if nt >= nn:
        grid = (nt, nn)
        p_map = lambda t, n: (0, 0)
        x_map = lambda t, n: (n, 0, t)
        o_map = lambda t, n: (n, 0, t)
    else:
        grid = (nn, nt)
        p_map = lambda n, t: (0, 0)
        x_map = lambda n, t: (n, 0, t)
        o_map = lambda n, t: (n, 0, t)

    cost = pl.CostEstimate(
        flops=2 * N * BR * C * T,
        transcendentals=0,
        bytes_accessed=x_bpe * N * C * T + 4 * N * BR * T + x_bpe * BR * C,
    )

    out = pl.pallas_call(
        _fused_pool_kernel,
        out_shape=jax.ShapeDtypeStruct((N, BR, T), jnp.float32),
        grid=grid,
        in_specs=[
            # All bins' pooling matrices: constant index_map -> fetched once,
            # resident in VMEM (only BR*C elements).
            pl.BlockSpec((BR, C), p_map),
            # EEG data for the current subject-block / time-tile (streamed once).
            pl.BlockSpec((bN, C, tile_t), x_map),
        ],
        # Unpadded output rows: second-to-last block dim equals the full array
        # dim, so no pad-drop copy in the wrapper and no dead HBM writeback.
        out_specs=pl.BlockSpec((bN, BR, tile_t), o_map),
        compiler_params=pltpu.CompilerParams(
            # No accumulation across any grid axis -> both axes parallel.
            dimension_semantics=("parallel", "parallel"),
            vmem_limit_bytes=vmem_limit,
        ),
        cost_estimate=cost,
    )(p_flat, x_in)

    stacked = out.reshape(N, B, R, T)  # free reshape of leading dims
    if as_tuple:
        # Matches Regions2Bins.forward's tuple-of-bins API (costs B slice
        # copies outside the kernel; prefer as_tuple=False when fusing
        # downstream).
        return tuple(stacked[:, b] for b in range(B))
    return stacked


def make_pooling_matrices(num_bins, num_regions, num_channels):
    """Deterministic synthetic channel splits: bin b assigns channel c to
    region (c + b) % num_regions; mean pooling over each region."""
    mats = np.zeros((num_bins, num_regions, num_channels), dtype=np.float32)
    for b in range(num_bins):
        assign = (np.arange(num_channels) + b) % num_regions
        for r in range(num_regions):
            idx = np.where(assign == r)[0]
            if len(idx) > 0:
                mats[b, r, idx] = 1.0 / len(idx)
    return jnp.asarray(mats)


if __name__ == "__main__":
    # Small, module-consistent shapes: x = (num_subjects, num_channels, num_time_steps)
    N, C, T = 2, 16, 128
    num_bins, num_regions = 3, 4

    key = jax.random.PRNGKey(0)
    x = jax.random.normal(key, (N, C, T), dtype=jnp.float32)
    pool_mats = make_pooling_matrices(num_bins, num_regions, C)

    # f32 path (exact)
    bins = regions_to_bins(x, pool_mats)
    bins = jax.block_until_ready(bins)

    ref = tuple(jnp.einsum("rc,nct->nrt", pool_mats[b], x) for b in range(num_bins))
    for got, want in zip(bins, ref):
        np.testing.assert_allclose(np.asarray(got), np.asarray(want), rtol=1e-5, atol=1e-5)

    # bf16-streamed path (optional, gated; looser tolerance)
    bins_bf16 = regions_to_bins(x, pool_mats, stream_bf16=True, as_tuple=False)
    bins_bf16 = jax.block_until_ready(bins_bf16)
    ref_stacked = jnp.stack(ref, axis=1)  # (N, B, R, T)
    np.testing.assert_allclose(
        np.asarray(bins_bf16), np.asarray(ref_stacked), rtol=2e-2, atol=2e-2
    )

    # TODO(synk): ChannelSplit / ChGroup fitting and the precompute() (ROCKET
    # feature) pathways are data-structure bookkeeping / non-mean pooling with
    # no tensor hot path here; only the group mean pooling forward is a Pallas
    # kernel.
    print("KERNEL_OK")
</pallas_src>

<mosaic_0001>
module attributes {stable_mosaic.version = 11 : i64} {
  func.func @_fused_pool_kernel(%arg0: i32, %arg1: i32, %arg2: memref<12x16xf32, #tpu.memory_space<vmem>>, %arg3: memref<2x16x128xf32, #tpu.memory_space<vmem>>, %arg4: memref<2x12x128xf32, #tpu.memory_space<vmem>>) attributes {dimension_semantics = [#tpu.dimension_semantics<parallel>, #tpu.dimension_semantics<parallel>], iteration_bounds = array<i64: 1, 1>, scalar_prefetch = 0 : i64, scratch_operands = 0 : i64, tpu.core_type = #tpu.core_type<tc>, window_params = [{pipeline_mode = #tpu.pipeline_mode<synchronous>, transform_indices = @transform_0, window_bounds = array<i64: 12, 16>}, {transform_indices = @transform_1, window_bounds = array<i64: 2, 16, 128>}, {transform_indices = @transform_2, window_bounds = array<i64: 2, 12, 128>}]} {
    %c0 = arith.constant 0 : index
    %c0_0 = arith.constant 0 : index
    %0 = vector.load %arg2[%c0, %c0_0] : memref<12x16xf32, #tpu.memory_space<vmem>>, vector<12x16xf32>
    %c0_1 = arith.constant 0 : index
    %c0_2 = arith.constant 0 : index
    %c0_3 = arith.constant 0 : index
    %1 = vector.load %arg3[%c0_1, %c0_2, %c0_3] : memref<2x16x128xf32, #tpu.memory_space<vmem>>, vector<1x16x128xf32>
    %2 = vector.shape_cast %1 : vector<1x16x128xf32> to vector<16x128xf32>
    %cst = arith.constant dense<0.000000e+00> : vector<12x128xf32>
    %3 = tpu.matmul %0, %2, %cst {dimension_numbers = #tpu.dot_dimension_numbers<[1], [0], [0], [1], [0, 0, 1, 1], [], []>} : vector<12x16xf32>, vector<16x128xf32>, vector<12x128xf32> -> vector<12x128xf32>
    %c0_4 = arith.constant 0 : index
    %c0_5 = arith.constant 0 : index
    %c0_6 = arith.constant 0 : index
    %4 = vector.load %arg4[%c0_4, %c0_5, %c0_6] : memref<2x12x128xf32, #tpu.memory_space<vmem>>, vector<1x12x128xf32>
    %5 = vector.shape_cast %4 : vector<1x12x128xf32> to vector<12x128xf32>
    %6 = vector.shape_cast %3 : vector<12x128xf32> to vector<1x12x128xf32>
    tpu.vector_store %arg4[%c0_4, %c0_5, %c0_6], %6 {strides = array<i32>} : memref<2x12x128xf32, #tpu.memory_space<vmem>>, vector<1x12x128xf32>,
    %c1 = arith.constant 1 : index
    %c0_7 = arith.constant 0 : index
    %c0_8 = arith.constant 0 : index
    %7 = vector.load %arg3[%c1, %c0_7, %c0_8] : memref<2x16x128xf32, #tpu.memory_space<vmem>>, vector<1x16x128xf32>
    %8 = vector.shape_cast %7 : vector<1x16x128xf32> to vector<16x128xf32>
    %cst_9 = arith.constant dense<0.000000e+00> : vector<12x128xf32>
    %9 = tpu.matmul %0, %8, %cst_9 {dimension_numbers = #tpu.dot_dimension_numbers<[1], [0], [0], [1], [0, 0, 1, 1], [], []>} : vector<12x16xf32>, vector<16x128xf32>, vector<12x128xf32> -> vector<12x128xf32>
    %c1_10 = arith.constant 1 : index
    %c0_11 = arith.constant 0 : index
    %c0_12 = arith.constant 0 : index
    %10 = vector.load %arg4[%c1_10, %c0_11, %c0_12] : memref<2x12x128xf32, #tpu.memory_space<vmem>>, vector<1x12x128xf32>
    %11 = vector.shape_cast %10 : vector<1x12x128xf32> to vector<12x128xf32>
    %12 = vector.shape_cast %9 : vector<12x128xf32> to vector<1x12x128xf32>
    tpu.vector_store %arg4[%c1_10, %c0_11, %c0_12], %12 {strides = array<i32>} : memref<2x12x128xf32, #tpu.memory_space<vmem>>, vector<1x12x128xf32>,
    return
  }
  func.func @transform_0(%arg0: i32, %arg1: i32) -> (i32, i32) {
    %c0_i32 = arith.constant 0 : i32
    %c0_i32_0 = arith.constant 0 : i32
    %c0_i32_1 = arith.constant 0 : i32
    return %c0_i32, %c0_i32_0 : i32, i32
  }
  func.func @transform_1(%arg0: i32, %arg1: i32) -> (i32, i32, i32) {
    %c0_i32 = arith.constant 0 : i32
    %c0_i32_0 = arith.constant 0 : i32
    return %arg1, %c0_i32, %arg0 : i32, i32, i32
  }
  func.func @transform_2(%arg0: i32, %arg1: i32) -> (i32, i32, i32) {
    %c0_i32 = arith.constant 0 : i32
    %c0_i32_0 = arith.constant 0 : i32
    return %arg1, %c0_i32, %arg0 : i32, i32, i32
  }
}

</mosaic_0001>

<llo_original>
// kernel: tpu_custom_call.1
$region0: #{tpu_custom_call.1}
  #allocation0 [shape = 'u32[]', space=smem, size = 0x4, offset = 0x4, fixed_abs, tag = 'smem constant byte address 0x4 - core index']
  #allocation1 [shape = 'u32[144,128]{1,0:T(1,128)}', space=vmem, size = 0x12000, scoped, tag = 'internal scratch']
  %s0 = inlined_call_operand.hbm [shape: f32[12,16], index: 0, kind: input, shape index: {}]
  %s1 = inlined_call_operand.hbm [shape: f32[2,16,128], index: 1, kind: input, shape index: {}]
  %s2 = inlined_call_operand.vmem [shape: f32[2,12,128], index: 2, kind: output, shape index: {}]
  %s3 = sld [smem:[#allocation0]]
  $region26: #{tpu_custom_call.1} parent=0
    _
  %s5 = ssub.s32 1, %s3
  %s6 = scalar_select 0, %s5, %s3
  $region1: #{tpu_custom_call.1} parent=0
    #allocation2 [shape = 'u8[8192]{0}', space=vmem, size = 0x2000, scoped, tag = 'input window, operand 0, single buffered']
    #allocation3 [shape = 's32[1]{0}', space=sflag, size = 0x4, scoped, tag = 'scoped memory for tpu_custom_call.1']
    #allocation4 [shape = 'u8[16384]{0}', space=vmem, size = 0x4000, scoped, tag = 'input window, operand 1, single buffered']
    #allocation5 [shape = 's32[1]{0}', space=sflag, size = 0x4, scoped, tag = 'scoped memory for tpu_custom_call.1']
    %7 = vsyncpa [#allocation3], 0
    %8 = vsyncpa [#allocation5], 0
    // Predicated region
    $region2: #{tpu_custom_call.1} parent=1 // pred_check
      _
    $region3: #{tpu_custom_call.1} parent=1 // pred_check_branch
      %10 = sbr.rel (0) target = $region5
    $region4: #{tpu_custom_call.1} parent=1 // pred_region
      %s12 = ssub.s32 256, 256
      %13 = vsyncadd [#allocation3], %s12
      %s14 = sshll.u32 [#allocation2], 4
      %s15 = int_to_ptr.vmem [resolvable:$true] %s14
      %20 = dma.hbm_to_vmem [thread:$0]  %s0, 256, %s15, [#allocation3], 128, 128, 8
    $region5: #{tpu_custom_call.1} parent=1 // pred_fallthru
      _
    // Predicated region
    $region6: #{tpu_custom_call.1} parent=1 // pred_check
      _
    $region7: #{tpu_custom_call.1} parent=1 // pred_check_branch
      %22 = sbr.rel (0) target = $region9
    $region8: #{tpu_custom_call.1} parent=1 // pred_region
      %s24 = ssub.s32 512, 512
      %25 = vsyncadd [#allocation5], %s24
      %s26 = sshll.u32 [#allocation4], 4
      %s27 = int_to_ptr.vmem [resolvable:$true] %s26
      %32 = dma.hbm_to_vmem [thread:$0]  %s1, 512, %s27, [#allocation5], 128, 128, 8
    $region9: #{tpu_custom_call.1} parent=1 // pred_fallthru
      _
    // Predicated region
    $region10: #{tpu_custom_call.1} parent=1 // pred_check
      _
    $region11: #{tpu_custom_call.1} parent=1 // pred_check_branch
      %34 = sbr.rel (0) target = $region13
    $region12: #{tpu_custom_call.1} parent=1 // pred_region
      %35 = dma.done [#allocation3], 256
    $region13: #{tpu_custom_call.1} parent=1 // pred_fallthru
      _
    // Predicated region
    $region14: #{tpu_custom_call.1} parent=1 // pred_check
      _
    $region15: #{tpu_custom_call.1} parent=1 // pred_check_branch
      %37 = sbr.rel (0) target = $region17
    $region16: #{tpu_custom_call.1} parent=1 // pred_region
      %38 = dma.done [#allocation5], 512
    $region17: #{tpu_custom_call.1} parent=1 // pred_fallthru
      _
    %v39 = vld [vmem:[#allocation2] sm:$0xff]
    %v40 = vld [vmem:[#allocation2 + $0x8] sm:$0xf]
    %v41 = vld [vmem:[#allocation4] sm:$0xff]
    %v42 = vld [vmem:[#allocation4 + $0x8] sm:$0xff]
    %vm43 = vcmask 130048
    %v45 = vsel %vm43, %v39, 0
    %v48 = vsel %vm43, %v40, 0
    %50 = vmatprep.subr.mxu0 0.0
    %51 = vmatpush1.msra.mxu0 %v41
    %52 = vmatprep.subr.mxu0 0.0
    %53 = vmatpush1.msra.mxu0 %v42
    %54 = vmatprep.subr.mxu0 0.0
    %55 = vmatpush1.msra.mxu0 0.0
    %56 = vmatprep.subr.mxu0 0.0
    %57 = vmatpush1.msra.mxu0 0.0
    %58 = vmatprep.subr.mxu0 0.0
    %59 = vmatpush1.msra.mxu0 0.0
    %60 = vmatprep.subr.mxu0 0.0
    %61 = vmatpush1.msra.mxu0 0.0
    %62 = vmatprep.subr.mxu0 0.0
    %63 = vmatpush1.msra.mxu0 0.0
    %64 = vmatprep.subr.mxu0 0.0
    %65 = vmatpush1.msra.mxu0 0.0
    %66 = vmatprep.subr.mxu0 0.0
    %67 = vmatpush1.msra.mxu0 0.0
    %68 = vmatprep.subr.mxu0 0.0
    %69 = vmatpush1.msra.mxu0 0.0
    %70 = vmatprep.subr.mxu0 0.0
    %71 = vmatpush1.msra.mxu0 0.0
    %72 = vmatprep.subr.mxu0 0.0
    %73 = vmatpush1.msra.mxu0 0.0
    %74 = vmatprep.subr.mxu0 0.0
    %75 = vmatpush1.msra.mxu0 0.0
    %76 = vmatprep.subr.mxu0 0.0
    %77 = vmatpush1.msra.mxu0 0.0
    %78 = vmatprep.subr.mxu0 0.0
    %79 = vmatpush1.msra.mxu0 0.0
    %80 = vmatprep.subr.mxu0 0.0
    %81 = vmatpush1.msra.mxu0 0.0
    %82 = vmatprep.subr.mxu0 0.0
    %83 = vmatpush1.msra.mxu0 0.0
    %84 = vmatprep.subr.mxu0 0.0
    %85 = vmatpush1.msra.mxu0 0.0
    %86 = vmatprep.subr.mxu0 0.0
    %87 = vmatpush1.msra.mxu0 0.0
    %88 = vmatprep.subr.mxu0 0.0
    %89 = vmatpush1.msra.mxu0 0.0
    %90 = vmatprep.subr.mxu0 0.0
    %91 = vmatpush1.msra.mxu0 0.0
    %92 = vmatprep.subr.mxu0 0.0
    %93 = vmatpush1.msra.mxu0 0.0
    %94 = vmatprep.subr.mxu0 0.0
    %95 = vmatpush1.msra.mxu0 0.0
    %96 = vmatprep.subr.mxu0 0.0
    %97 = vmatpush1.msra.mxu0 0.0
    %98 = vmatprep.subr.mxu0 0.0
    %99 = vmatpush1.msra.mxu0 0.0
    %100 = vmatprep.subr.mxu0 0.0
    %101 = vmatpush1.msra.mxu0 0.0
    %102 = vmatprep.subr.mxu0 0.0
    %103 = vmatpush1.msra.mxu0 0.0
    %104 = vmatprep.subr.mxu0 0.0
    %105 = vmatpush1.msra.mxu0 0.0
    %106 = vmatprep.subr.mxu0 0.0
    %107 = vmatpush1.msra.mxu0 0.0
    %108 = vmatprep.subr.mxu0 0.0
    %109 = vmatpush1.msra.mxu0 0.0
    %110 = vmatprep.subr.mxu0 0.0
    %111 = vmatpush1.msra.mxu0 0.0
    %112 = vmatprep.subr.mxu0 0.0
    %113 = vmatpush1.msra.mxu0 0.0
    %114 = vmatprep.mubr.f32.mxu0 0.0
    %115 = vmatmul.mubr.f32.gmra.mrb[0].mxu0 %v45
    %v116 = vpop.f32.mrb[0].mxu0
    %v117 = vadd.f32 0.0, %v116
    %v118 = vpop.f32.mrb[0].mxu0
    %119 = vmatprep.mubr.f32.mxu0 0.0
    %120 = vmatmul.mubr.f32.gmra.mrb[0].mxu0 %v48
    %v121 = vpop.f32.mrb[0].mxu0
    %v122 = vadd.f32 0.0, %v121
    %v123 = vpop.f32.mrb[0].mxu0
    %124 = vdwg.mxu0
    %125 = vst [vmem:[%s2] sm:$0xff] %v117
    %126 = vst [vmem:[%s2 + $0x8] sm:$0xf] %v122
    %s127 = scalar_lea.vmem [#allocation4], 16
    %v128 = vld [vmem:[%s127] sm:$0xff]
    %v129 = vld [vmem:[%s127 + $0x8] sm:$0xff]
    %130 = vmatprep.subr.mxu0 0.0
    %131 = vmatpush1.msra.mxu0 %v128
    %132 = vmatprep.subr.mxu0 0.0
    %133 = vmatpush1.msra.mxu0 %v129
    %134 = vmatprep.subr.mxu0 0.0
    %135 = vmatpush1.msra.mxu0 0.0
    %136 = vmatprep.subr.mxu0 0.0
    %137 = vmatpush1.msra.mxu0 0.0
    %138 = vmatprep.subr.mxu0 0.0
    %139 = vmatpush1.msra.mxu0 0.0
    %140 = vmatprep.subr.mxu0 0.0
    %141 = vmatpush1.msra.mxu0 0.0
    %142 = vmatprep.subr.mxu0 0.0
    %143 = vmatpush1.msra.mxu0 0.0
    %144 = vmatprep.subr.mxu0 0.0
    %145 = vmatpush1.msra.mxu0 0.0
    %146 = vmatprep.subr.mxu0 0.0
    %147 = vmatpush1.msra.mxu0 0.0
    %148 = vmatprep.subr.mxu0 0.0
    %149 = vmatpush1.msra.mxu0 0.0
    %150 = vmatprep.subr.mxu0 0.0
    %151 = vmatpush1.msra.mxu0 0.0
    %152 = vmatprep.subr.mxu0 0.0
    %153 = vmatpush1.msra.mxu0 0.0
    %154 = vmatprep.subr.mxu0 0.0
    %155 = vmatpush1.msra.mxu0 0.0
    %156 = vmatprep.subr.mxu0 0.0
    %157 = vmatpush1.msra.mxu0 0.0
    %158 = vmatprep.subr.mxu0 0.0
    %159 = vmatpush1.msra.mxu0 0.0
    %160 = vmatprep.subr.mxu0 0.0
    %161 = vmatpush1.msra.mxu0 0.0
    %162 = vmatprep.subr.mxu0 0.0
    %163 = vmatpush1.msra.mxu0 0.0
    %164 = vmatprep.subr.mxu0 0.0
    %165 = vmatpush1.msra.mxu0 0.0
    %166 = vmatprep.subr.mxu0 0.0
    %167 = vmatpush1.msra.mxu0 0.0
    %168 = vmatprep.subr.mxu0 0.0
    %169 = vmatpush1.msra.mxu0 0.0
    %170 = vmatprep.subr.mxu0 0.0
    %171 = vmatpush1.msra.mxu0 0.0
    %172 = vmatprep.subr.mxu0 0.0
    %173 = vmatpush1.msra.mxu0 0.0
    %174 = vmatprep.subr.mxu0 0.0
    %175 = vmatpush1.msra.mxu0 0.0
    %176 = vmatprep.subr.mxu0 0.0
    %177 = vmatpush1.msra.mxu0 0.0
    %178 = vmatprep.subr.mxu0 0.0
    %179 = vmatpush1.msra.mxu0 0.0
    %180 = vmatprep.subr.mxu0 0.0
    %181 = vmatpush1.msra.mxu0 0.0
    %182 = vmatprep.subr.mxu0 0.0
    %183 = vmatpush1.msra.mxu0 0.0
    %184 = vmatprep.subr.mxu0 0.0
    %185 = vmatpush1.msra.mxu0 0.0
    %186 = vmatprep.subr.mxu0 0.0
    %187 = vmatpush1.msra.mxu0 0.0
    %188 = vmatprep.subr.mxu0 0.0
    %189 = vmatpush1.msra.mxu0 0.0
    %190 = vmatprep.subr.mxu0 0.0
    %191 = vmatpush1.msra.mxu0 0.0
    %192 = vmatprep.subr.mxu0 0.0
    %193 = vmatpush1.msra.mxu0 0.0
    %194 = vmatprep.mubr.f32.mxu0 0.0
    %195 = vmatmul.mubr.f32.gmra.mrb[0].mxu0 %v45
    %v196 = vpop.f32.mrb[0].mxu0
    %v197 = vadd.f32 0.0, %v196
    %v198 = vpop.f32.mrb[0].mxu0
    %199 = vmatprep.mubr.f32.mxu0 0.0
    %200 = vmatmul.mubr.f32.gmra.mrb[0].mxu0 %v48
    %v201 = vpop.f32.mrb[0].mxu0
    %v202 = vadd.f32 0.0, %v201
    %v203 = vpop.f32.mrb[0].mxu0
    %204 = vdwg.mxu0
    %s205 = scalar_lea.vmem %s2, 16
    %206 = vst [vmem:[%s205] sm:$0xff] %v197
    %207 = vst [vmem:[%s205 + $0x8] sm:$0xf] %v202
    // Predicated region
    $region18: #{tpu_custom_call.1} parent=1 // pred_check
      _
    $region19: #{tpu_custom_call.1} parent=1 // pred_check_branch
      %209 = sbr.rel (0) target = $region21
    $region20: #{tpu_custom_call.1} parent=1 // pred_region
      _
    $region21: #{tpu_custom_call.1} parent=1 // pred_fallthru
      _
    // Predicated region
    $region22: #{tpu_custom_call.1} parent=1 // pred_check
      _
    $region23: #{tpu_custom_call.1} parent=1 // pred_check_branch
      %211 = sbr.rel (0) target = $region25
    $region24: #{tpu_custom_call.1} parent=1 // pred_region
      _
    $region25: #{tpu_custom_call.1} parent=1 // pred_fallthru
      _
    %212 = vsyncpa [#allocation3], 1
    %213 = vsyncpa [#allocation5], 1

</llo_original>
